<compile_context>
chip_gen: v7x
topology: tpu7x:2x2x1
jax: 0.10.0
libtpu: 0.0.40
codegen_flags: <defaults>
</compile_context>

<pallas_src>
import functools

import jax
import jax.numpy as jnp
from jax.experimental import pallas as pl
from jax.experimental.pallas import tpu as pltpu

W0_SIREN = 30.0  # FunctionalSiren default w0


def _round_up(n, m):
    return -(-n // m) * m


# ----------------------------------------------------------------------------
# 1) Sine module:  sin(w0 * x), any input shape (elementwise).
# ----------------------------------------------------------------------------
def _sine_kernel(x_ref, o_ref, *, w0):
    o_ref[...] = jnp.sin(w0 * x_ref[...])


def sine(x, w0=1.0, *, lanes=1024, max_rows_per_tile=256):
    """Pallas equivalent of Sine.forward: sin(w0 * x)."""
    orig_shape = x.shape
    flat = x.reshape(-1)
    n = flat.shape[0]

    # Lane-dense 2-D layout: last dim = `lanes` (multiple of 128), rows tiled.
    rows = max(1, _round_up(n, lanes) // lanes)
    tile_r = min(max_rows_per_tile, _round_up(rows, 8))
    rows_pad = _round_up(rows, tile_r)
    n_pad = rows_pad * lanes
    flat = jnp.pad(flat, (0, n_pad - n))
    x2 = flat.reshape(rows_pad, lanes)

    out = pl.pallas_call(
        functools.partial(_sine_kernel, w0=float(w0)),
        out_shape=jax.ShapeDtypeStruct((rows_pad, lanes), x.dtype),
        grid_spec=pltpu.PrefetchScalarGridSpec(
            num_scalar_prefetch=0,
            grid=(rows_pad // tile_r,),
            in_specs=[pl.BlockSpec((tile_r, lanes), lambda i: (i, 0))],
            out_specs=pl.BlockSpec((tile_r, lanes), lambda i: (i, 0)),
        ),
        compiler_params=pltpu.CompilerParams(dimension_semantics=("parallel",)),
    )(x2)
    return out.reshape(-1)[:n].reshape(orig_shape)


# ----------------------------------------------------------------------------
# 2) Fused SIREN INR forward (transposed, lane-dense layout).
# ----------------------------------------------------------------------------
def _make_inr_kernel(num_layers, first_layer_fma):
    """Kernel ref order: x, w_0..w_{L-1}, b_0..b_{L-1}, out.

    Layout (transposed vs the original version):
      x_ref   : (in_dim, tile_n)          -- N on the lane axis
      w_refs  : (out_f, in_f)             -- pre-transposed; hidden ones *w0
      b_refs  : (out_f, 1)                -- hidden ones *w0
      out_ref : (out_dim, tile_n)         -- lane-dense store
    Hidden layers: sin(W h + b); last layer: W h + b + 0.5.
    """

    def kernel(*refs):
        x_ref = refs[0]
        w_refs = refs[1 : 1 + num_layers]
        b_refs = refs[1 + num_layers : 1 + 2 * num_layers]
        out_ref = refs[-1]

        h = x_ref[...].astype(jnp.float32)  # (in_dim, tile_n)
        for i in range(num_layers - 1):
            w = w_refs[i][...]              # (out_f, in_f), w0 pre-folded
            b = b_refs[i][...]              # (out_f, 1),   w0 pre-folded
            if i == 0 and first_layer_fma:
                # Tiny contraction (in_dim <= 8): broadcast FMAs on the VPU,
                # skipping the MXU push/pop round-trip (matters most on v5e).
                z = b
                for k in range(w.shape[1]):
                    z = z + w[:, k : k + 1] * h[k : k + 1, :]
            else:
                z = jnp.dot(w, h, preferred_element_type=jnp.float32) + b
            h = jnp.sin(z)
        z = (
            jnp.dot(w_refs[-1][...], h, preferred_element_type=jnp.float32)
            + b_refs[-1][...]
        )
        out_ref[...] = (z + 0.5).astype(out_ref.dtype)

    return kernel


def _choose_tile(n, tile_n):
    """Pick a lane-dense (multiple of 128) tile along N.

    Prefer big tiles (amortize ~0.35us/step), but keep >= ~8 grid steps when N
    allows so the 'parallel' axis can shard across v7x's two TensorCores and
    the pipeline has something to overlap.
    """
    tile = max(128, (min(tile_n, _round_up(n, 128)) // 128) * 128)
    while tile > 128 and _round_up(n, tile) // tile < 8:
        tile = max(128, ((tile // 2) // 128) * 128)
    return tile


def functional_inr(x, weights, biases, *, w0=W0_SIREN, tile_n=1024):
    """Pallas implementation of the SIREN INR forward.

    Args:
      x:       (N, in_dim) float32 input coordinates (N may be ragged).
      weights: list of arrays, each of shape (1, in_f, out_f, 1) (module layout).
      biases:  list of arrays, each of shape (1, out_f, 1).

    Returns:
      (N, out_dim_last) float32.
    """
    num_layers = len(weights)
    assert len(biases) == num_layers

    # Module glue: w.squeeze(0).squeeze(-1) -> (in_f, out_f); F.linear(x, W.T, b)
    # == x @ W + b.  We compute in the transposed layout z = (W.T) @ h, and fold
    # the SIREN w0 scale into the hidden-layer parameters here (one tiny
    # host-side op on 32x32 weights instead of a per-element VPU mul in-kernel).
    ws_t, bs_c = [], []
    for li, (w, b) in enumerate(zip(weights, biases)):
        w2 = jnp.squeeze(w, axis=(0, 3)).T           # (out_f, in_f)
        b2 = jnp.squeeze(b, axis=(0, 2))[:, None]    # (out_f, 1)
        if li < num_layers - 1:
            w2 = w2 * w0
            b2 = b2 * w0
        ws_t.append(w2.astype(jnp.float32))
        bs_c.append(b2.astype(jnp.float32))

    N, in_dim = x.shape
    assert ws_t[0].shape[1] == in_dim
    out_dim = ws_t[-1].shape[0]

    tile = _choose_tile(N, tile_n)
    n_pad = _round_up(N, tile)

    # N on the lane axis; pad ragged N with zeros (sliced off below).
    xt = jnp.pad(x.astype(jnp.float32).T, ((0, 0), (0, n_pad - N)))  # (in_dim, n_pad)

    grid = (n_pad // tile,)

    in_specs = [pl.BlockSpec((in_dim, tile), lambda i: (0, i))]
    # Full (tiny) weight / bias blocks; constant block index keeps them resident
    # in VMEM across every grid step (no per-step re-DMA).
    for w2 in ws_t:
        in_specs.append(pl.BlockSpec(w2.shape, lambda i: (0, 0)))
    for b2 in bs_c:
        in_specs.append(pl.BlockSpec(b2.shape, lambda i: (0, 0)))

    out_spec = pl.BlockSpec((out_dim, tile), lambda i: (0, i))

    kernel = _make_inr_kernel(num_layers, first_layer_fma=(in_dim <= 8))

    out_t = pl.pallas_call(
        kernel,
        out_shape=jax.ShapeDtypeStruct((out_dim, n_pad), jnp.float32),
        grid_spec=pltpu.PrefetchScalarGridSpec(
            num_scalar_prefetch=0,
            grid=grid,
            in_specs=in_specs,
            out_specs=out_spec,
        ),
        compiler_params=pltpu.CompilerParams(
            dimension_semantics=("parallel",),
        ),
    )(xt, *ws_t, *bs_c)

    return out_t[:, :N].T  # (N, out_dim)


def functional_inr_reference(x, weights, biases, w0=W0_SIREN):
    """Pure-JAX reference matching the PyTorch module exactly (f32-accurate dots)."""
    ws = [jnp.squeeze(w, axis=(0, 3)) for w in weights]
    bs = [jnp.squeeze(b, axis=(0, 2)) for b in biases]
    hp = jax.lax.Precision.HIGHEST
    h = x
    for w, b in zip(ws[:-1], bs[:-1]):
        h = jnp.sin(w0 * (jnp.dot(h, w, precision=hp) + b))
    return jnp.dot(h, ws[-1], precision=hp) + bs[-1] + 0.5


if __name__ == "__main__":
    key = jax.random.PRNGKey(0)

    # ---- 1) Plain Sine module: sin(w0 * x) on a 4-D tensor -----------------
    k_sine, key = jax.random.split(key)
    xs = jax.random.normal(k_sine, (2, 4, 16, 16), dtype=jnp.float32)
    ys = jax.block_until_ready(sine(xs, w0=1.0))
    ys_ref = jnp.sin(1.0 * xs)
    assert ys.shape == xs.shape, ys.shape
    assert jnp.allclose(ys, ys_ref, atol=1e-6, rtol=1e-6), (
        float(jnp.max(jnp.abs(ys - ys_ref)))
    )

    # ---- 2) Fused SIREN INR forward (Sine inside the MLP) ------------------
    # Ragged N=300 exercises the pad/partial-tile path; hidden=32, out=1.
    N, in_dim, hidden, out_dim = 300, 2, 32, 1
    layer_dims = [(in_dim, hidden), (hidden, hidden), (hidden, out_dim)]

    k_x, *k_params = jax.random.split(key, 1 + 2 * len(layer_dims))
    x = jax.random.normal(k_x, (N, in_dim), dtype=jnp.float32)

    weights, biases = [], []
    for li, (din, dout) in enumerate(layer_dims):
        kw = k_params[2 * li]
        kb = k_params[2 * li + 1]
        # Module-style storage: (1, in_f, out_f, 1) and (1, out_f, 1).
        w = jax.random.uniform(
            kw, (1, din, dout, 1), dtype=jnp.float32, minval=-1.0, maxval=1.0
        ) / jnp.sqrt(jnp.float32(din))
        b = jax.random.uniform(
            kb, (1, dout, 1), dtype=jnp.float32, minval=-0.1, maxval=0.1
        )
        weights.append(w)
        biases.append(b)

    out = jax.block_until_ready(functional_inr(x, weights, biases))
    ref = functional_inr_reference(x, weights, biases)
    assert out.shape == (N, out_dim), out.shape
    # w0=30 folding / FMA reordering reassociate a few f32 ops; sin(30*.) layers
    # amplify ulp-level argument differences, so allow a slightly looser atol.
    err = float(jnp.max(jnp.abs(out - ref)))
    assert err < 2e-3, err

    print("KERNEL_OK")
</pallas_src>

<mosaic_0001>
module attributes {stable_mosaic.version = 11 : i64} {
  func.func @_sine_kernel(%arg0: i32, %arg1: memref<8x1024xf32, #tpu.memory_space<vmem>>, %arg2: memref<8x1024xf32, #tpu.memory_space<vmem>>) attributes {dimension_semantics = [#tpu.dimension_semantics<parallel>], iteration_bounds = array<i64: 1>, scalar_prefetch = 0 : i64, scratch_operands = 0 : i64, tpu.core_type = #tpu.core_type<tc>, window_params = [{transform_indices = @transform_0, window_bounds = array<i64: 8, 1024>}, {transform_indices = @transform_1, window_bounds = array<i64: 8, 1024>}]} {
    %c0 = arith.constant 0 : index
    %c0_0 = arith.constant 0 : index
    %0 = vector.load %arg1[%c0, %c0_0] : memref<8x1024xf32, #tpu.memory_space<vmem>>, vector<8x1024xf32>
    %cst = arith.constant 1.000000e+00 : f32
    %1 = vector.broadcast %cst : f32 to vector<8x1024xf32>
    %2 = arith.mulf %1, %0 : vector<8x1024xf32>
    %3 = math.sin %2 : vector<8x1024xf32>
    %c0_1 = arith.constant 0 : index
    %c0_2 = arith.constant 0 : index
    %4 = vector.load %arg2[%c0_1, %c0_2] : memref<8x1024xf32, #tpu.memory_space<vmem>>, vector<8x1024xf32>
    tpu.vector_store %arg2[%c0_1, %c0_2], %3 {strides = array<i32>} : memref<8x1024xf32, #tpu.memory_space<vmem>>, vector<8x1024xf32>,
    return
  }
  func.func @transform_0(%arg0: i32) -> (i32, i32) {
    %c0_i32 = arith.constant 0 : i32
    %c0_i32_0 = arith.constant 0 : i32
    return %arg0, %c0_i32 : i32, i32
  }
  func.func @transform_1(%arg0: i32) -> (i32, i32) {
    %c0_i32 = arith.constant 0 : i32
    %c0_i32_0 = arith.constant 0 : i32
    return %arg0, %c0_i32 : i32, i32
  }
}

</mosaic_0001>

<llo_original>
// kernel: tpu_custom_call.1
$region0: #{tpu_custom_call.1}
  #allocation0 [shape = 'u32[]', space=smem, size = 0x4, offset = 0x4, fixed_abs, tag = 'smem constant byte address 0x4 - core index']
  #allocation1 [shape = 'u32[144,128]{1,0:T(1,128)}', space=vmem, size = 0x12000, scoped, tag = 'internal scratch']
  %s0 = inlined_call_operand.hbm [shape: f32[8,1024], index: 0, kind: input, shape index: {}]
  %s1 = inlined_call_operand.hbm [shape: f32[8,1024], index: 1, kind: output, shape index: {}]
  %s2 = sld [smem:[#allocation0]]
  $region18: #{tpu_custom_call.1} parent=0
    _
  %s4 = ssub.s32 1, %s2
  %s5 = scalar_select 0, %s4, %s2
  $region1: #{tpu_custom_call.1} parent=0
    #allocation2 [shape = 'u8[32768]{0}', space=vmem, size = 0x8000, scoped, tag = 'input window, operand 0, single buffered']
    #allocation3 [shape = 's32[1]{0}', space=sflag, size = 0x4, scoped, tag = 'scoped memory for tpu_custom_call.1']
    #allocation4 [shape = 's32[1]{0}', space=sflag, size = 0x4, scoped, tag = 'scoped memory for tpu_custom_call.1']
    #allocation5 [shape = 'u8[32768]{0}', space=vmem, size = 0x8000, scoped, tag = 'output window, operand 0, single buffered']
    %6 = vsyncpa [#allocation3], 0
    %7 = vsyncpa [#allocation4], 0
    // Predicated region
    $region2: #{tpu_custom_call.1} parent=1 // pred_check
      _
    $region3: #{tpu_custom_call.1} parent=1 // pred_check_branch
      %9 = sbr.rel (0) target = $region5
    $region4: #{tpu_custom_call.1} parent=1 // pred_region
      %s11 = ssub.s32 1024, 1024
      %12 = vsyncadd [#allocation3], %s11
      %s14 = sshll.u32 [#allocation2], 4
      %s15 = int_to_ptr.vmem [resolvable:$true] %s14
      %17 = dma.hbm_to_vmem [thread:$0]  %s0, 1024, %s15, [#allocation3]
    $region5: #{tpu_custom_call.1} parent=1 // pred_fallthru
      _
    // Predicated region
    $region6: #{tpu_custom_call.1} parent=1 // pred_check
      _
    $region7: #{tpu_custom_call.1} parent=1 // pred_check_branch
      %19 = sbr.rel (0) target = $region9
    $region8: #{tpu_custom_call.1} parent=1 // pred_region
      %20 = dma.done [#allocation3], 1024
    $region9: #{tpu_custom_call.1} parent=1 // pred_fallthru
      _
    %v21 = vld [vmem:[#allocation2] sm:$0xff]
    %v22 = vld [vmem:[#allocation2 + $0x8] sm:$0xff]
    %v23 = vld [vmem:[#allocation2 + $0x10] sm:$0xff]
    %v24 = vld [vmem:[#allocation2 + $0x18] sm:$0xff]
    %v25 = vld [vmem:[#allocation2 + $0x20] sm:$0xff]
    %v26 = vld [vmem:[#allocation2 + $0x28] sm:$0xff]
    %v27 = vld [vmem:[#allocation2 + $0x30] sm:$0xff]
    %v28 = vld [vmem:[#allocation2 + $0x38] sm:$0xff]
    %v29 = vand.u32 2147483647, %v21
    %vm30 = vcmp.le.f32.partialorder %v29, 0.7853982
    %vm31 = vcmp.lt.s32.totalorder %v21, 0
    %v32 = vand.u32 %v21, 2139095040
    %v33 = vshrl.u32 %v32, 23
    %v34 = vsub.s32 %v33, 127
    %v35 = vand.u32 2147483647, %v21
    %v36 = vand.u32 %v35, 8388607
    %v37 = vor.u32 %v36, 8388608
    %v38 = vsub.s32 0, %v37
    %v39 = vadd.s32 %v34, 1
    %vm40 = vcmp.gt.s32.totalorder %v39, 0
    %v41 = vsel %vm40, %v39, 0
    %v42 = vshrl.u32 %v41, 5
    %v43 = vand.u32 %v41, 31
    %v44 = vsub.s32 32, %v43
    %v45 = vshrl.u32 683565275, %v44
    %v46 = vshll.u32 683565275, %v43
    %v47 = vshrl.u32 2475754826, %v44
    %v48 = vor.u32 %v46, %v47
    %v49 = vshll.u32 2475754826, %v43
    %v50 = vshrl.u32 2131351028, %v44
    %v51 = vor.u32 %v49, %v50
    %v52 = vshll.u32 2131351028, %v43
    %v53 = vshrl.u32 2102212464, %v44
    %v54 = vor.u32 %v52, %v53
    %v55 = vshll.u32 2102212464, %v43
    %v56 = vshrl.u32 920167782, %v44
    %v57 = vor.u32 %v55, %v56
    %v58 = vshll.u32 920167782, %v43
    %v59 = vshrl.u32 1326507024, %v44
    %v60 = vor.u32 %v58, %v59
    %vm61 = vcmp.lt.s32.totalorder %v42, 1
    %vm62 = vcmp.lt.s32.totalorder %v42, 2
    %vm63 = vcmp.lt.s32.totalorder %v42, 3
    %vm64 = vcmp.lt.s32.totalorder %v42, 4
    %v65 = vsel %vm61, %v45, %v48
    %v66 = vsel %vm64, %v54, 2102212464
    %v67 = vsel %vm63, %v51, %v66
    %v68 = vsel %vm62, %v65, %v67
    %v69 = vsel %vm61, %v48, %v51
    %v70 = vsel %vm64, %v57, 920167782
    %v71 = vsel %vm63, %v54, %v70
    %v72 = vsel %vm62, %v69, %v71
    %v73 = vsel %vm61, %v51, %v54
    %v74 = vsel %vm64, %v60, 1326507024
    %v75 = vsel %vm63, %v57, %v74
    %v76 = vsel %vm62, %v73, %v75
    %v77 = vshll.u32 %v37, 8
    %v78 = vmul.u32.u64.compose %v77, %v76
    %v79 = vextract.low.u32 %v78
    %v80 = vextract.high.u32 %v78
    %v81 = vmul.u32.u64.compose %v77, %v72
    %v82 = vextract.low.u32 %v81
    %v83 = vextract.high.u32 %v81
    %v84 = vmul.u32 %v77, %v68
    %v85 = vadd.s32 %v80, %v82
    %vm86 = vc.u32 %v80, %v82
    %v87 = vadd.s32 %v83, 1
    %v88 = vsel %vm86, %v87, %v83
    %v89 = vadd.s32 %v84, %v88
    %v90 = vadd.s32 %v89, 536870912
    %v91 = vshrl.u32 %v90, 30
    %v92 = vshll.u32 %v91, 30
    %v93 = vsub.s32 %v89, %v92
    %vm94 = vcmp.lt.s32.totalorder %v93, 0
    %v95 = vsub.s32 0, %v93
    %v96 = vsel %vm94, %v95, %v93
    %v97 = vclz %v96
    %v98 = vsub.s32 %v97, 2
    %vm99 = vcmp.gt.s32.totalorder 0, %v98
    %v100 = vsel %vm99, 0, %v98
    %v101 = vsub.s32 32, %v100
    %v102 = vshll.u32 %v93, %v100
    %v103 = vshrl.u32 %v85, %v101
    %v104 = vor.u32 %v102, %v103
    %v105 = vsub.s32 4294967266, %v100
    %v106 = vadd.s32 %v105, 127
    %v107 = vshll.u32 %v106, 23
    %v108 = vor.u32 4788187, %v107
    %v109 = vand.u32 2147483647, %v108
    %v111 = vcvt.s32.f32 %v104
    %v112 = vmul.f32 %v111, %v109
    %v113 = vxor.u32 %v112, 2147483648
    %v114 = vsel %vm31, %v113, %v112
    %v115 = vsub.s32 4, %v91
    %v116 = vsel %vm31, %v115, %v91
    %v117 = vsel %vm30, %v21, %v114
    %v118 = vsel %vm30, 0, %v116
    %v119 = vcosq.f32.pop %v117
    %v120 = vsinq.f32.pop %v117
    %vm121 = vweird.f32 %v21
    %v122 = vadd.s32 %v118, 3
    %v123 = vand.u32 %v122, 3
    %vm124 = vcmp.lt.s32.totalorder %v123, 2
    %vm125 = vcmp.eq.s32.totalorder %v123, 0
    %v126 = vxor.u32 %v120, 2147483648
    %v127 = vsel %vm125, %v119, %v126
    %vm128 = vcmp.eq.s32.totalorder %v123, 2
    %v129 = vxor.u32 %v119, 2147483648
    %v130 = vsel %vm128, %v129, %v120
    %v131 = vsel %vm124, %v127, %v130
    %v132 = vsel %vm121, nan, %v131
    %v133 = vand.u32 2147483647, %v22
    %vm134 = vcmp.le.f32.partialorder %v133, 0.7853982
    %vm135 = vcmp.lt.s32.totalorder %v22, 0
    %v136 = vand.u32 %v22, 2139095040
    %v137 = vshrl.u32 %v136, 23
    %v138 = vsub.s32 %v137, 127
    %v139 = vand.u32 2147483647, %v22
    %v140 = vand.u32 %v139, 8388607
    %v141 = vor.u32 %v140, 8388608
    %v142 = vsub.s32 0, %v141
    %v143 = vadd.s32 %v138, 1
    %vm144 = vcmp.gt.s32.totalorder %v143, 0
    %v145 = vsel %vm144, %v143, 0
    %v146 = vshrl.u32 %v145, 5
    %v147 = vand.u32 %v145, 31
    %v148 = vsub.s32 32, %v147
    %v149 = vshrl.u32 683565275, %v148
    %v150 = vshll.u32 683565275, %v147
    %v151 = vshrl.u32 2475754826, %v148
    %v152 = vor.u32 %v150, %v151
    %v153 = vshll.u32 2475754826, %v147
    %v154 = vshrl.u32 2131351028, %v148
    %v155 = vor.u32 %v153, %v154
    %v156 = vshll.u32 2131351028, %v147
    %v157 = vshrl.u32 2102212464, %v148
    %v158 = vor.u32 %v156, %v157
    %v159 = vshll.u32 2102212464, %v147
    %v160 = vshrl.u32 920167782, %v148
    %v161 = vor.u32 %v159, %v160
    %v162 = vshll.u32 920167782, %v147
    %v163 = vshrl.u32 1326507024, %v148
    %v164 = vor.u32 %v162, %v163
    %vm165 = vcmp.lt.s32.totalorder %v146, 1
    %vm166 = vcmp.lt.s32.totalorder %v146, 2
    %vm167 = vcmp.lt.s32.totalorder %v146, 3
    %vm168 = vcmp.lt.s32.totalorder %v146, 4
    %v169 = vsel %vm165, %v149, %v152
    %v170 = vsel %vm168, %v158, 2102212464
    %v171 = vsel %vm167, %v155, %v170
    %v172 = vsel %vm166, %v169, %v171
    %v173 = vsel %vm165, %v152, %v155
    %v174 = vsel %vm168, %v161, 920167782
    %v175 = vsel %vm167, %v158, %v174
    %v176 = vsel %vm166, %v173, %v175
    %v177 = vsel %vm165, %v155, %v158
    %v178 = vsel %vm168, %v164, 1326507024
    %v179 = vsel %vm167, %v161, %v178
    %v180 = vsel %vm166, %v177, %v179
    %v181 = vshll.u32 %v141, 8
    %v182 = vmul.u32.u64.compose %v181, %v180
    %v183 = vextract.low.u32 %v182
    %v184 = vextract.high.u32 %v182
    %v185 = vmul.u32.u64.compose %v181, %v176
    %v186 = vextract.low.u32 %v185
    %v187 = vextract.high.u32 %v185
    %v188 = vmul.u32 %v181, %v172
    %v189 = vadd.s32 %v184, %v186
    %vm190 = vc.u32 %v184, %v186
    %v191 = vadd.s32 %v187, 1
    %v192 = vsel %vm190, %v191, %v187
    %v193 = vadd.s32 %v188, %v192
    %v194 = vadd.s32 %v193, 536870912
    %v195 = vshrl.u32 %v194, 30
    %v196 = vshll.u32 %v195, 30
    %v197 = vsub.s32 %v193, %v196
    %vm198 = vcmp.lt.s32.totalorder %v197, 0
    %v199 = vsub.s32 0, %v197
    %v200 = vsel %vm198, %v199, %v197
    %v201 = vclz %v200
    %v202 = vsub.s32 %v201, 2
    %vm203 = vcmp.gt.s32.totalorder 0, %v202
    %v204 = vsel %vm203, 0, %v202
    %v205 = vsub.s32 32, %v204
    %v206 = vshll.u32 %v197, %v204
    %v207 = vshrl.u32 %v189, %v205
    %v208 = vor.u32 %v206, %v207
    %v209 = vsub.s32 4294967266, %v204
    %v210 = vadd.s32 %v209, 127
    %v211 = vshll.u32 %v210, 23
    %v212 = vor.u32 4788187, %v211
    %v213 = vand.u32 2147483647, %v212
    %v215 = vcvt.s32.f32 %v208
    %v216 = vmul.f32 %v215, %v213
    %v217 = vxor.u32 %v216, 2147483648
    %v218 = vsel %vm135, %v217, %v216
    %v219 = vsub.s32 4, %v195
    %v220 = vsel %vm135, %v219, %v195
    %v221 = vsel %vm134, %v22, %v218
    %v222 = vsel %vm134, 0, %v220
    %v223 = vcosq.f32.pop %v221
    %v224 = vsinq.f32.pop %v221
    %vm225 = vweird.f32 %v22
    %v226 = vadd.s32 %v222, 3
    %v227 = vand.u32 %v226, 3
    %vm228 = vcmp.lt.s32.totalorder %v227, 2
    %vm229 = vcmp.eq.s32.totalorder %v227, 0
    %v230 = vxor.u32 %v224, 2147483648
    %v231 = vsel %vm229, %v223, %v230
    %vm232 = vcmp.eq.s32.totalorder %v227, 2
    %v233 = vxor.u32 %v223, 2147483648
    %v234 = vsel %vm232, %v233, %v224
    %v235 = vsel %vm228, %v231, %v234
    %v236 = vsel %vm225, nan, %v235
    %v237 = vand.u32 2147483647, %v23
    %vm238 = vcmp.le.f32.partialorder %v237, 0.7853982
    %vm239 = vcmp.lt.s32.totalorder %v23, 0
    %v240 = vand.u32 %v23, 2139095040
    %v241 = vshrl.u32 %v240, 23
    %v242 = vsub.s32 %v241, 127
    %v243 = vand.u32 2147483647, %v23
    %v244 = vand.u32 %v243, 8388607
    %v245 = vor.u32 %v244, 8388608
    %v246 = vsub.s32 0, %v245
    %v247 = vadd.s32 %v242, 1
    %vm248 = vcmp.gt.s32.totalorder %v247, 0
    %v249 = vsel %vm248, %v247, 0
    %v250 = vshrl.u32 %v249, 5
    %v251 = vand.u32 %v249, 31
    %v252 = vsub.s32 32, %v251
    %v253 = vshrl.u32 683565275, %v252
    %v254 = vshll.u32 683565275, %v251
    %v255 = vshrl.u32 2475754826, %v252
    %v256 = vor.u32 %v254, %v255
    %v257 = vshll.u32 2475754826, %v251
    %v258 = vshrl.u32 2131351028, %v252
    %v259 = vor.u32 %v257, %v258
    %v260 = vshll.u32 2131351028, %v251
    %v261 = vshrl.u32 2102212464, %v252
    %v262 = vor.u32 %v260, %v261
    %v263 = vshll.u32 2102212464, %v251
    %v264 = vshrl.u32 920167782, %v252
    %v265 = vor.u32 %v263, %v264
    %v266 = vshll.u32 920167782, %v251
    %v267 = vshrl.u32 1326507024, %v252
    %v268 = vor.u32 %v266, %v267
    %vm269 = vcmp.lt.s32.totalorder %v250, 1
    %vm270 = vcmp.lt.s32.totalorder %v250, 2
    %vm271 = vcmp.lt.s32.totalorder %v250, 3
    %vm272 = vcmp.lt.s32.totalorder %v250, 4
    %v273 = vsel %vm269, %v253, %v256
    %v274 = vsel %vm272, %v262, 2102212464
    %v275 = vsel %vm271, %v259, %v274
    %v276 = vsel %vm270, %v273, %v275
    %v277 = vsel %vm269, %v256, %v259
    %v278 = vsel %vm272, %v265, 920167782
    %v279 = vsel %vm271, %v262, %v278
    %v280 = vsel %vm270, %v277, %v279
    %v281 = vsel %vm269, %v259, %v262
    %v282 = vsel %vm272, %v268, 1326507024
    %v283 = vsel %vm271, %v265, %v282
    %v284 = vsel %vm270, %v281, %v283
    %v285 = vshll.u32 %v245, 8
    %v286 = vmul.u32.u64.compose %v285, %v284
    %v287 = vextract.low.u32 %v286
    %v288 = vextract.high.u32 %v286
    %v289 = vmul.u32.u64.compose %v285, %v280
    %v290 = vextract.low.u32 %v289
    %v291 = vextract.high.u32 %v289
    %v292 = vmul.u32 %v285, %v276
    %v293 = vadd.s32 %v288, %v290
    %vm294 = vc.u32 %v288, %v290
    %v295 = vadd.s32 %v291, 1
    %v296 = vsel %vm294, %v295, %v291
    %v297 = vadd.s32 %v292, %v296
    %v298 = vadd.s32 %v297, 536870912
    %v299 = vshrl.u32 %v298, 30
    %v300 = vshll.u32 %v299, 30
    %v301 = vsub.s32 %v297, %v300
    %vm302 = vcmp.lt.s32.totalorder %v301, 0
    %v303 = vsub.s32 0, %v301
    %v304 = vsel %vm302, %v303, %v301
    %v305 = vclz %v304
    %v306 = vsub.s32 %v305, 2
    %vm307 = vcmp.gt.s32.totalorder 0, %v306
    %v308 = vsel %vm307, 0, %v306
    %v309 = vsub.s32 32, %v308
    %v310 = vshll.u32 %v301, %v308
    %v311 = vshrl.u32 %v293, %v309
    %v312 = vor.u32 %v310, %v311
    %v313 = vsub.s32 4294967266, %v308
    %v314 = vadd.s32 %v313, 127
    %v315 = vshll.u32 %v314, 23
    %v316 = vor.u32 4788187, %v315
    %v317 = vand.u32 2147483647, %v316
    %v319 = vcvt.s32.f32 %v312
    %v320 = vmul.f32 %v319, %v317
    %v321 = vxor.u32 %v320, 2147483648
    %v322 = vsel %vm239, %v321, %v320
    %v323 = vsub.s32 4, %v299
    %v324 = vsel %vm239, %v323, %v299
    %v325 = vsel %vm238, %v23, %v322
    %v326 = vsel %vm238, 0, %v324
    %v327 = vcosq.f32.pop %v325
    %v328 = vsinq.f32.pop %v325
    %vm329 = vweird.f32 %v23
    %v330 = vadd.s32 %v326, 3
    %v331 = vand.u32 %v330, 3
    %vm332 = vcmp.lt.s32.totalorder %v331, 2
    %vm333 = vcmp.eq.s32.totalorder %v331, 0
    %v334 = vxor.u32 %v328, 2147483648
    %v335 = vsel %vm333, %v327, %v334
    %vm336 = vcmp.eq.s32.totalorder %v331, 2
    %v337 = vxor.u32 %v327, 2147483648
    %v338 = vsel %vm336, %v337, %v328
    %v339 = vsel %vm332, %v335, %v338
    %v340 = vsel %vm329, nan, %v339
    %v341 = vand.u32 2147483647, %v24
    %vm342 = vcmp.le.f32.partialorder %v341, 0.7853982
    %vm343 = vcmp.lt.s32.totalorder %v24, 0
    %v344 = vand.u32 %v24, 2139095040
    %v345 = vshrl.u32 %v344, 23
    %v346 = vsub.s32 %v345, 127
    %v347 = vand.u32 2147483647, %v24
    %v348 = vand.u32 %v347, 8388607
    %v349 = vor.u32 %v348, 8388608
    %v350 = vsub.s32 0, %v349
    %v351 = vadd.s32 %v346, 1
    %vm352 = vcmp.gt.s32.totalorder %v351, 0
    %v353 = vsel %vm352, %v351, 0
    %v354 = vshrl.u32 %v353, 5
    %v355 = vand.u32 %v353, 31
    %v356 = vsub.s32 32, %v355
    %v357 = vshrl.u32 683565275, %v356
    %v358 = vshll.u32 683565275, %v355
    %v359 = vshrl.u32 2475754826, %v356
    %v360 = vor.u32 %v358, %v359
    %v361 = vshll.u32 2475754826, %v355
    %v362 = vshrl.u32 2131351028, %v356
    %v363 = vor.u32 %v361, %v362
    %v364 = vshll.u32 2131351028, %v355
    %v365 = vshrl.u32 2102212464, %v356
    %v366 = vor.u32 %v364, %v365
    %v367 = vshll.u32 2102212464, %v355
    %v368 = vshrl.u32 920167782, %v356
    %v369 = vor.u32 %v367, %v368
    %v370 = vshll.u32 920167782, %v355
    %v371 = vshrl.u32 1326507024, %v356
    %v372 = vor.u32 %v370, %v371
    %vm373 = vcmp.lt.s32.totalorder %v354, 1
    %vm374 = vcmp.lt.s32.totalorder %v354, 2
    %vm375 = vcmp.lt.s32.totalorder %v354, 3
    %vm376 = vcmp.lt.s32.totalorder %v354, 4
    %v377 = vsel %vm373, %v357, %v360
    %v378 = vsel %vm376, %v366, 2102212464
    %v379 = vsel %vm375, %v363, %v378
    %v380 = vsel %vm374, %v377, %v379
    %v381 = vsel %vm373, %v360, %v363
    %v382 = vsel %vm376, %v369, 920167782
    %v383 = vsel %vm375, %v366, %v382
    %v384 = vsel %vm374, %v381, %v383
    %v385 = vsel %vm373, %v363, %v366
    %v386 = vsel %vm376, %v372, 1326507024
    %v387 = vsel %vm375, %v369, %v386
    %v388 = vsel %vm374, %v385, %v387
    %v389 = vshll.u32 %v349, 8
    %v390 = vmul.u32.u64.compose %v389, %v388
    %v391 = vextract.low.u32 %v390
    %v392 = vextract.high.u32 %v390
    %v393 = vmul.u32.u64.compose %v389, %v384
    %v394 = vextract.low.u32 %v393
    %v395 = vextract.high.u32 %v393
    %v396 = vmul.u32 %v389, %v380
    %v397 = vadd.s32 %v392, %v394
    %vm398 = vc.u32 %v392, %v394
    %v399 = vadd.s32 %v395, 1
    %v400 = vsel %vm398, %v399, %v395
    %v401 = vadd.s32 %v396, %v400
    %v402 = vadd.s32 %v401, 536870912
    %v403 = vshrl.u32 %v402, 30
    %v404 = vshll.u32 %v403, 30
    %v405 = vsub.s32 %v401, %v404
    %vm406 = vcmp.lt.s32.totalorder %v405, 0
    %v407 = vsub.s32 0, %v405
    %v408 = vsel %vm406, %v407, %v405
    %v409 = vclz %v408
    %v410 = vsub.s32 %v409, 2
    %vm411 = vcmp.gt.s32.totalorder 0, %v410
    %v412 = vsel %vm411, 0, %v410
    %v413 = vsub.s32 32, %v412
    %v414 = vshll.u32 %v405, %v412
    %v415 = vshrl.u32 %v397, %v413
    %v416 = vor.u32 %v414, %v415
    %v417 = vsub.s32 4294967266, %v412
    %v418 = vadd.s32 %v417, 127
    %v419 = vshll.u32 %v418, 23
    %v420 = vor.u32 4788187, %v419
    %v421 = vand.u32 2147483647, %v420
    %v423 = vcvt.s32.f32 %v416
    %v424 = vmul.f32 %v423, %v421
    %v425 = vxor.u32 %v424, 2147483648
    %v426 = vsel %vm343, %v425, %v424
    %v427 = vsub.s32 4, %v403
    %v428 = vsel %vm343, %v427, %v403
    %v429 = vsel %vm342, %v24, %v426
    %v430 = vsel %vm342, 0, %v428
    %v431 = vcosq.f32.pop %v429
    %v432 = vsinq.f32.pop %v429
    %vm433 = vweird.f32 %v24
    %v434 = vadd.s32 %v430, 3
    %v435 = vand.u32 %v434, 3
    %vm436 = vcmp.lt.s32.totalorder %v435, 2
    %vm437 = vcmp.eq.s32.totalorder %v435, 0
    %v438 = vxor.u32 %v432, 2147483648
    %v439 = vsel %vm437, %v431, %v438
    %vm440 = vcmp.eq.s32.totalorder %v435, 2
    %v441 = vxor.u32 %v431, 2147483648
    %v442 = vsel %vm440, %v441, %v432
    %v443 = vsel %vm436, %v439, %v442
    %v444 = vsel %vm433, nan, %v443
    %v445 = vand.u32 2147483647, %v25
    %vm446 = vcmp.le.f32.partialorder %v445, 0.7853982
    %vm447 = vcmp.lt.s32.totalorder %v25, 0
    %v448 = vand.u32 %v25, 2139095040
    %v449 = vshrl.u32 %v448, 23
    %v450 = vsub.s32 %v449, 127
    %v451 = vand.u32 2147483647, %v25
    %v452 = vand.u32 %v451, 8388607
    %v453 = vor.u32 %v452, 8388608
    %v454 = vsub.s32 0, %v453
    %v455 = vadd.s32 %v450, 1
    %vm456 = vcmp.gt.s32.totalorder %v455, 0
    %v457 = vsel %vm456, %v455, 0
    %v458 = vshrl.u32 %v457, 5
    %v459 = vand.u32 %v457, 31
    %v460 = vsub.s32 32, %v459
    %v461 = vshrl.u32 683565275, %v460
    %v462 = vshll.u32 683565275, %v459
    %v463 = vshrl.u32 2475754826, %v460
    %v464 = vor.u32 %v462, %v463
    %v465 = vshll.u32 2475754826, %v459
    %v466 = vshrl.u32 2131351028, %v460
    %v467 = vor.u32 %v465, %v466
    %v468 = vshll.u32 2131351028, %v459
    %v469 = vshrl.u32 2102212464, %v460
    %v470 = vor.u32 %v468, %v469
    %v471 = vshll.u32 2102212464, %v459
    %v472 = vshrl.u32 920167782, %v460
    %v473 = vor.u32 %v471, %v472
    %v474 = vshll.u32 920167782, %v459
    %v475 = vshrl.u32 1326507024, %v460
    %v476 = vor.u32 %v474, %v475
    %vm477 = vcmp.lt.s32.totalorder %v458, 1
    %vm478 = vcmp.lt.s32.totalorder %v458, 2
    %vm479 = vcmp.lt.s32.totalorder %v458, 3
    %vm480 = vcmp.lt.s32.totalorder %v458, 4
    %v481 = vsel %vm477, %v461, %v464
    %v482 = vsel %vm480, %v470, 2102212464
    %v483 = vsel %vm479, %v467, %v482
    %v484 = vsel %vm478, %v481, %v483
    %v485 = vsel %vm477, %v464, %v467
    %v486 = vsel %vm480, %v473, 920167782
    %v487 = vsel %vm479, %v470, %v486
    %v488 = vsel %vm478, %v485, %v487
    %v489 = vsel %vm477, %v467, %v470
    %v490 = vsel %vm480, %v476, 1326507024
    %v491 = vsel %vm479, %v473, %v490
    %v492 = vsel %vm478, %v489, %v491
    %v493 = vshll.u32 %v453, 8
    %v494 = vmul.u32.u64.compose %v493, %v492
    %v495 = vextract.low.u32 %v494
    %v496 = vextract.high.u32 %v494
    %v497 = vmul.u32.u64.compose %v493, %v488
    %v498 = vextract.low.u32 %v497
    %v499 = vextract.high.u32 %v497
    %v500 = vmul.u32 %v493, %v484
    %v501 = vadd.s32 %v496, %v498
    %vm502 = vc.u32 %v496, %v498
    %v503 = vadd.s32 %v499, 1
    %v504 = vsel %vm502, %v503, %v499
    %v505 = vadd.s32 %v500, %v504
    %v506 = vadd.s32 %v505, 536870912
    %v507 = vshrl.u32 %v506, 30
    %v508 = vshll.u32 %v507, 30
    %v509 = vsub.s32 %v505, %v508
    %vm510 = vcmp.lt.s32.totalorder %v509, 0
    %v511 = vsub.s32 0, %v509
    %v512 = vsel %vm510, %v511, %v509
    %v513 = vclz %v512
    %v514 = vsub.s32 %v513, 2
    %vm515 = vcmp.gt.s32.totalorder 0, %v514
    %v516 = vsel %vm515, 0, %v514
    %v517 = vsub.s32 32, %v516
    %v518 = vshll.u32 %v509, %v516
    %v519 = vshrl.u32 %v501, %v517
    %v520 = vor.u32 %v518, %v519
    %v521 = vsub.s32 4294967266, %v516
    %v522 = vadd.s32 %v521, 127
    %v523 = vshll.u32 %v522, 23
    %v524 = vor.u32 4788187, %v523
    %v525 = vand.u32 2147483647, %v524
    %v527 = vcvt.s32.f32 %v520
    %v528 = vmul.f32 %v527, %v525
    %v529 = vxor.u32 %v528, 2147483648
    %v530 = vsel %vm447, %v529, %v528
    %v531 = vsub.s32 4, %v507
    %v532 = vsel %vm447, %v531, %v507
    %v533 = vsel %vm446, %v25, %v530
    %v534 = vsel %vm446, 0, %v532
    %v535 = vcosq.f32.pop %v533
    %v536 = vsinq.f32.pop %v533
    %vm537 = vweird.f32 %v25
    %v538 = vadd.s32 %v534, 3
    %v539 = vand.u32 %v538, 3
    %vm540 = vcmp.lt.s32.totalorder %v539, 2
    %vm541 = vcmp.eq.s32.totalorder %v539, 0
    %v542 = vxor.u32 %v536, 2147483648
    %v543 = vsel %vm541, %v535, %v542
    %vm544 = vcmp.eq.s32.totalorder %v539, 2
    %v545 = vxor.u32 %v535, 2147483648
    %v546 = vsel %vm544, %v545, %v536
    %v547 = vsel %vm540, %v543, %v546
    %v548 = vsel %vm537, nan, %v547
    %v549 = vand.u32 2147483647, %v26
    %vm550 = vcmp.le.f32.partialorder %v549, 0.7853982
    %vm551 = vcmp.lt.s32.totalorder %v26, 0
    %v552 = vand.u32 %v26, 2139095040
    %v553 = vshrl.u32 %v552, 23
    %v554 = vsub.s32 %v553, 127
    %v555 = vand.u32 2147483647, %v26
    %v556 = vand.u32 %v555, 8388607
    %v557 = vor.u32 %v556, 8388608
    %v558 = vsub.s32 0, %v557
    %v559 = vadd.s32 %v554, 1
    %vm560 = vcmp.gt.s32.totalorder %v559, 0
    %v561 = vsel %vm560, %v559, 0
    %v562 = vshrl.u32 %v561, 5
    %v563 = vand.u32 %v561, 31
    %v564 = vsub.s32 32, %v563
    %v565 = vshrl.u32 683565275, %v564
    %v566 = vshll.u32 683565275, %v563
    %v567 = vshrl.u32 2475754826, %v564
    %v568 = vor.u32 %v566, %v567
    %v569 = vshll.u32 2475754826, %v563
    %v570 = vshrl.u32 2131351028, %v564
    %v571 = vor.u32 %v569, %v570
    %v572 = vshll.u32 2131351028, %v563
    %v573 = vshrl.u32 2102212464, %v564
    %v574 = vor.u32 %v572, %v573
    %v575 = vshll.u32 2102212464, %v563
    %v576 = vshrl.u32 920167782, %v564
    %v577 = vor.u32 %v575, %v576
    %v578 = vshll.u32 920167782, %v563
    %v579 = vshrl.u32 1326507024, %v564
    %v580 = vor.u32 %v578, %v579
    %vm581 = vcmp.lt.s32.totalorder %v562, 1
    %vm582 = vcmp.lt.s32.totalorder %v562, 2
    %vm583 = vcmp.lt.s32.totalorder %v562, 3
    %vm584 = vcmp.lt.s32.totalorder %v562, 4
    %v585 = vsel %vm581, %v565, %v568
    %v586 = vsel %vm584, %v574, 2102212464
    %v587 = vsel %vm583, %v571, %v586
    %v588 = vsel %vm582, %v585, %v587
    %v589 = vsel %vm581, %v568, %v571
    %v590 = vsel %vm584, %v577, 920167782
    %v591 = vsel %vm583, %v574, %v590
    %v592 = vsel %vm582, %v589, %v591
    %v593 = vsel %vm581, %v571, %v574
    %v594 = vsel %vm584, %v580, 1326507024
    %v595 = vsel %vm583, %v577, %v594
    %v596 = vsel %vm582, %v593, %v595
    %v597 = vshll.u32 %v557, 8
    %v598 = vmul.u32.u64.compose %v597, %v596
    %v599 = vextract.low.u32 %v598
    %v600 = vextract.high.u32 %v598
    %v601 = vmul.u32.u64.compose %v597, %v592
    %v602 = vextract.low.u32 %v601
    %v603 = vextract.high.u32 %v601
    %v604 = vmul.u32 %v597, %v588
    %v605 = vadd.s32 %v600, %v602
    %vm606 = vc.u32 %v600, %v602
    %v607 = vadd.s32 %v603, 1
    %v608 = vsel %vm606, %v607, %v603
    %v609 = vadd.s32 %v604, %v608
    %v610 = vadd.s32 %v609, 536870912
    %v611 = vshrl.u32 %v610, 30
    %v612 = vshll.u32 %v611, 30
    %v613 = vsub.s32 %v609, %v612
    %vm614 = vcmp.lt.s32.totalorder %v613, 0
    %v615 = vsub.s32 0, %v613
    %v616 = vsel %vm614, %v615, %v613
    %v617 = vclz %v616
    %v618 = vsub.s32 %v617, 2
    %vm619 = vcmp.gt.s32.totalorder 0, %v618
    %v620 = vsel %vm619, 0, %v618
    %v621 = vsub.s32 32, %v620
    %v622 = vshll.u32 %v613, %v620
    %v623 = vshrl.u32 %v605, %v621
    %v624 = vor.u32 %v622, %v623
    %v625 = vsub.s32 4294967266, %v620
    %v626 = vadd.s32 %v625, 127
    %v627 = vshll.u32 %v626, 23
    %v628 = vor.u32 4788187, %v627
    %v629 = vand.u32 2147483647, %v628
    %v631 = vcvt.s32.f32 %v624
    %v632 = vmul.f32 %v631, %v629
    %v633 = vxor.u32 %v632, 2147483648
    %v634 = vsel %vm551, %v633, %v632
    %v635 = vsub.s32 4, %v611
    %v636 = vsel %vm551, %v635, %v611
    %v637 = vsel %vm550, %v26, %v634
    %v638 = vsel %vm550, 0, %v636
    %v639 = vcosq.f32.pop %v637
    %v640 = vsinq.f32.pop %v637
    %vm641 = vweird.f32 %v26
    %v642 = vadd.s32 %v638, 3
    %v643 = vand.u32 %v642, 3
    %vm644 = vcmp.lt.s32.totalorder %v643, 2
    %vm645 = vcmp.eq.s32.totalorder %v643, 0
    %v646 = vxor.u32 %v640, 2147483648
    %v647 = vsel %vm645, %v639, %v646
    %vm648 = vcmp.eq.s32.totalorder %v643, 2
    %v649 = vxor.u32 %v639, 2147483648
    %v650 = vsel %vm648, %v649, %v640
    %v651 = vsel %vm644, %v647, %v650
    %v652 = vsel %vm641, nan, %v651
    %v653 = vand.u32 2147483647, %v27
    %vm654 = vcmp.le.f32.partialorder %v653, 0.7853982
    %vm655 = vcmp.lt.s32.totalorder %v27, 0
    %v656 = vand.u32 %v27, 2139095040
    %v657 = vshrl.u32 %v656, 23
    %v658 = vsub.s32 %v657, 127
    %v659 = vand.u32 2147483647, %v27
    %v660 = vand.u32 %v659, 8388607
    %v661 = vor.u32 %v660, 8388608
    %v662 = vsub.s32 0, %v661
    %v663 = vadd.s32 %v658, 1
    %vm664 = vcmp.gt.s32.totalorder %v663, 0
    %v665 = vsel %vm664, %v663, 0
    %v666 = vshrl.u32 %v665, 5
    %v667 = vand.u32 %v665, 31
    %v668 = vsub.s32 32, %v667
    %v669 = vshrl.u32 683565275, %v668
    %v670 = vshll.u32 683565275, %v667
    %v671 = vshrl.u32 2475754826, %v668
    %v672 = vor.u32 %v670, %v671
    %v673 = vshll.u32 2475754826, %v667
    %v674 = vshrl.u32 2131351028, %v668
    %v675 = vor.u32 %v673, %v674
    %v676 = vshll.u32 2131351028, %v667
    %v677 = vshrl.u32 2102212464, %v668
    %v678 = vor.u32 %v676, %v677
    %v679 = vshll.u32 2102212464, %v667
    %v680 = vshrl.u32 920167782, %v668
    %v681 = vor.u32 %v679, %v680
    %v682 = vshll.u32 920167782, %v667
    %v683 = vshrl.u32 1326507024, %v668
    %v684 = vor.u32 %v682, %v683
    %vm685 = vcmp.lt.s32.totalorder %v666, 1
    %vm686 = vcmp.lt.s32.totalorder %v666, 2
    %vm687 = vcmp.lt.s32.totalorder %v666, 3
    %vm688 = vcmp.lt.s32.totalorder %v666, 4
    %v689 = vsel %vm685, %v669, %v672
    %v690 = vsel %vm688, %v678, 2102212464
    %v691 = vsel %vm687, %v675, %v690
    %v692 = vsel %vm686, %v689, %v691
    %v693 = vsel %vm685, %v672, %v675
    %v694 = vsel %vm688, %v681, 920167782
    %v695 = vsel %vm687, %v678, %v694
    %v696 = vsel %vm686, %v693, %v695
    %v697 = vsel %vm685, %v675, %v678
    %v698 = vsel %vm688, %v684, 1326507024
    %v699 = vsel %vm687, %v681, %v698
    %v700 = vsel %vm686, %v697, %v699
    %v701 = vshll.u32 %v661, 8
    %v702 = vmul.u32.u64.compose %v701, %v700
    %v703 = vextract.low.u32 %v702
    %v704 = vextract.high.u32 %v702
    %v705 = vmul.u32.u64.compose %v701, %v696
    %v706 = vextract.low.u32 %v705
    %v707 = vextract.high.u32 %v705
    %v708 = vmul.u32 %v701, %v692
    %v709 = vadd.s32 %v704, %v706
    %vm710 = vc.u32 %v704, %v706
    %v711 = vadd.s32 %v707, 1
    %v712 = vsel %vm710, %v711, %v707
    %v713 = vadd.s32 %v708, %v712
    %v714 = vadd.s32 %v713, 536870912
    %v715 = vshrl.u32 %v714, 30
    %v716 = vshll.u32 %v715, 30
    %v717 = vsub.s32 %v713, %v716
    %vm718 = vcmp.lt.s32.totalorder %v717, 0
    %v719 = vsub.s32 0, %v717
    %v720 = vsel %vm718, %v719, %v717
    %v721 = vclz %v720
    %v722 = vsub.s32 %v721, 2
    %vm723 = vcmp.gt.s32.totalorder 0, %v722
    %v724 = vsel %vm723, 0, %v722
    %v725 = vsub.s32 32, %v724
    %v726 = vshll.u32 %v717, %v724
    %v727 = vshrl.u32 %v709, %v725
    %v728 = vor.u32 %v726, %v727
    %v729 = vsub.s32 4294967266, %v724
    %v730 = vadd.s32 %v729, 127
    %v731 = vshll.u32 %v730, 23
    %v732 = vor.u32 4788187, %v731
    %v733 = vand.u32 2147483647, %v732
    %v735 = vcvt.s32.f32 %v728
    %v736 = vmul.f32 %v735, %v733
    %v737 = vxor.u32 %v736, 2147483648
    %v738 = vsel %vm655, %v737, %v736
    %v739 = vsub.s32 4, %v715
    %v740 = vsel %vm655, %v739, %v715
    %v741 = vsel %vm654, %v27, %v738
    %v742 = vsel %vm654, 0, %v740
    %v743 = vcosq.f32.pop %v741
    %v744 = vsinq.f32.pop %v741
    %vm745 = vweird.f32 %v27
    %v746 = vadd.s32 %v742, 3
    %v747 = vand.u32 %v746, 3
    %vm748 = vcmp.lt.s32.totalorder %v747, 2
    %vm749 = vcmp.eq.s32.totalorder %v747, 0
    %v750 = vxor.u32 %v744, 2147483648
    %v751 = vsel %vm749, %v743, %v750
    %vm752 = vcmp.eq.s32.totalorder %v747, 2
    %v753 = vxor.u32 %v743, 2147483648
    %v754 = vsel %vm752, %v753, %v744
    %v755 = vsel %vm748, %v751, %v754
    %v756 = vsel %vm745, nan, %v755
    %v757 = vand.u32 2147483647, %v28
    %vm758 = vcmp.le.f32.partialorder %v757, 0.7853982
    %vm759 = vcmp.lt.s32.totalorder %v28, 0
    %v760 = vand.u32 %v28, 2139095040
    %v761 = vshrl.u32 %v760, 23
    %v762 = vsub.s32 %v761, 127
    %v763 = vand.u32 2147483647, %v28
    %v764 = vand.u32 %v763, 8388607
    %v765 = vor.u32 %v764, 8388608
    %v766 = vsub.s32 0, %v765
    %v767 = vadd.s32 %v762, 1
    %vm768 = vcmp.gt.s32.totalorder %v767, 0
    %v769 = vsel %vm768, %v767, 0
    %v770 = vshrl.u32 %v769, 5
    %v771 = vand.u32 %v769, 31
    %v772 = vsub.s32 32, %v771
    %v773 = vshrl.u32 683565275, %v772
    %v774 = vshll.u32 683565275, %v771
    %v775 = vshrl.u32 2475754826, %v772
    %v776 = vor.u32 %v774, %v775
    %v777 = vshll.u32 2475754826, %v771
    %v778 = vshrl.u32 2131351028, %v772
    %v779 = vor.u32 %v777, %v778
    %v780 = vshll.u32 2131351028, %v771
    %v781 = vshrl.u32 2102212464, %v772
    %v782 = vor.u32 %v780, %v781
    %v783 = vshll.u32 2102212464, %v771
    %v784 = vshrl.u32 920167782, %v772
    %v785 = vor.u32 %v783, %v784
    %v786 = vshll.u32 920167782, %v771
    %v787 = vshrl.u32 1326507024, %v772
    %v788 = vor.u32 %v786, %v787
    %vm789 = vcmp.lt.s32.totalorder %v770, 1
    %vm790 = vcmp.lt.s32.totalorder %v770, 2
    %vm791 = vcmp.lt.s32.totalorder %v770, 3
    %vm792 = vcmp.lt.s32.totalorder %v770, 4
    %v793 = vsel %vm789, %v773, %v776
    %v794 = vsel %vm792, %v782, 2102212464
    %v795 = vsel %vm791, %v779, %v794
    %v796 = vsel %vm790, %v793, %v795
    %v797 = vsel %vm789, %v776, %v779
    %v798 = vsel %vm792, %v785, 920167782
    %v799 = vsel %vm791, %v782, %v798
    %v800 = vsel %vm790, %v797, %v799
    %v801 = vsel %vm789, %v779, %v782
    %v802 = vsel %vm792, %v788, 1326507024
    %v803 = vsel %vm791, %v785, %v802
    %v804 = vsel %vm790, %v801, %v803
    %v805 = vshll.u32 %v765, 8
    %v806 = vmul.u32.u64.compose %v805, %v804
    %v807 = vextract.low.u32 %v806
    %v808 = vextract.high.u32 %v806
    %v809 = vmul.u32.u64.compose %v805, %v800
    %v810 = vextract.low.u32 %v809
    %v811 = vextract.high.u32 %v809
    %v812 = vmul.u32 %v805, %v796
    %v813 = vadd.s32 %v808, %v810
    %vm814 = vc.u32 %v808, %v810
    %v815 = vadd.s32 %v811, 1
    %v816 = vsel %vm814, %v815, %v811
    %v817 = vadd.s32 %v812, %v816
    %v818 = vadd.s32 %v817, 536870912
    %v819 = vshrl.u32 %v818, 30
    %v820 = vshll.u32 %v819, 30
    %v821 = vsub.s32 %v817, %v820
    %vm822 = vcmp.lt.s32.totalorder %v821, 0
    %v823 = vsub.s32 0, %v821
    %v824 = vsel %vm822, %v823, %v821
    %v825 = vclz %v824
    %v826 = vsub.s32 %v825, 2
    %vm827 = vcmp.gt.s32.totalorder 0, %v826
    %v828 = vsel %vm827, 0, %v826
    %v829 = vsub.s32 32, %v828
    %v830 = vshll.u32 %v821, %v828
    %v831 = vshrl.u32 %v813, %v829
    %v832 = vor.u32 %v830, %v831
    %v833 = vsub.s32 4294967266, %v828
    %v834 = vadd.s32 %v833, 127
    %v835 = vshll.u32 %v834, 23
    %v836 = vor.u32 4788187, %v835
    %v837 = vand.u32 2147483647, %v836
    %v839 = vcvt.s32.f32 %v832
    %v840 = vmul.f32 %v839, %v837
    %v841 = vxor.u32 %v840, 2147483648
    %v842 = vsel %vm759, %v841, %v840
    %v843 = vsub.s32 4, %v819
    %v844 = vsel %vm759, %v843, %v819
    %v845 = vsel %vm758, %v28, %v842
    %v846 = vsel %vm758, 0, %v844
    %v847 = vcosq.f32.pop %v845
    %v848 = vsinq.f32.pop %v845
    %vm849 = vweird.f32 %v28
    %v850 = vadd.s32 %v846, 3
    %v851 = vand.u32 %v850, 3
    %vm852 = vcmp.lt.s32.totalorder %v851, 2
    %vm853 = vcmp.eq.s32.totalorder %v851, 0
    %v854 = vxor.u32 %v848, 2147483648
    %v855 = vsel %vm853, %v847, %v854
    %vm856 = vcmp.eq.s32.totalorder %v851, 2
    %v857 = vxor.u32 %v847, 2147483648
    %v858 = vsel %vm856, %v857, %v848
    %v859 = vsel %vm852, %v855, %v858
    %v860 = vsel %vm849, nan, %v859
    %861 = vst [vmem:[#allocation5] sm:$0xff] %v132
    %862 = vst [vmem:[#allocation5 + $0x8] sm:$0xff] %v236
    %863 = vst [vmem:[#allocation5 + $0x10] sm:$0xff] %v340
    %864 = vst [vmem:[#allocation5 + $0x18] sm:$0xff] %v444
    %865 = vst [vmem:[#allocation5 + $0x20] sm:$0xff] %v548
    %866 = vst [vmem:[#allocation5 + $0x28] sm:$0xff] %v652
    %867 = vst [vmem:[#allocation5 + $0x30] sm:$0xff] %v756
    %868 = vst [vmem:[#allocation5 + $0x38] sm:$0xff] %v860
    // Predicated region
    $region10: #{tpu_custom_call.1} parent=1 // pred_check
      _
    $region11: #{tpu_custom_call.1} parent=1 // pred_check_branch
      %870 = sbr.rel (0) target = $region13
    $region12: #{tpu_custom_call.1} parent=1 // pred_region
      %s872 = ssub.s32 1024, 1024
      %873 = vsyncadd [#allocation4], %s872
      %s875 = sshll.u32 [#allocation5], 4
      %s876 = int_to_ptr.vmem [resolvable:$true] %s875
      %878 = dma.vmem_to_hbm [thread:$0]  %s876, 1024, %s1, [#allocation4]
    $region13: #{tpu_custom_call.1} parent=1 // pred_fallthru
      _
    // Predicated region
    $region14: #{tpu_custom_call.1} parent=1 // pred_check
      _
    $region15: #{tpu_custom_call.1} parent=1 // pred_check_branch
      %880 = sbr.rel (0) target = $region17
    $region16: #{tpu_custom_call.1} parent=1 // pred_region
      %881 = dma.done [#allocation4], 1024
    $region17: #{tpu_custom_call.1} parent=1 // pred_fallthru
      _
    %882 = vsyncpa [#allocation3], 1
    %883 = vsyncpa [#allocation4], 1

</llo_original>
